<compile_context>
chip_gen: v7x
topology: tpu7x:2x2x1
jax: 0.10.0
libtpu: 0.0.40
codegen_flags: <defaults>
</compile_context>

<pallas_src>
import math
import functools

import jax
import jax.numpy as jnp
from jax.experimental import pallas as pl
from jax.experimental.pallas import tpu as pltpu

D_MODEL = 512
MAX_LEN = 100

# Per-buffer VMEM budget for one activation block (bytes). Kept well under the
# scoped VMEM default on every chip, accounting for double-buffered x / out
# plus the resident PE tile.
_VMEM_BLOCK_BUDGET = 4 << 20  # 4 MiB


# ----------------------------- Pallas kernel -----------------------------

def posenc_kernel(x_ref, pe_ref, o_ref, *, scale):
    # x_ref / o_ref: (TB, S, D) batch tile; pe_ref: (S, D) shared table.
    x = x_ref[...].astype(jnp.float32)                     # (TB, S, D)
    pe = pe_ref[...]                                        # (S, D), broadcast over TB
    o_ref[...] = (x * scale + pe[None, :, :]).astype(o_ref.dtype)


# ----------------------------- PE table (torch-buffer replica) ----------------

def make_pe_table(max_len, d_model):
    """Exact replica of the torch buffer: interleaved sin/cos (max_len, d_model)."""
    pos = jnp.arange(max_len, dtype=jnp.float32)[:, None]                       # (L, 1)
    angular_speed = jnp.exp(
        jnp.arange(0, d_model, 2, dtype=jnp.float32) * (-math.log(10000.0) / d_model)
    )                                                                            # (D/2,)
    pe = jnp.zeros((max_len, d_model), jnp.float32)
    pe = pe.at[:, 0::2].set(jnp.sin(pos * angular_speed))
    pe = pe.at[:, 1::2].set(jnp.cos(pos * angular_speed))
    return pe


# ----------------------------- wrapper -----------------------------

def _batch_tile(B, S, D, itemsize):
    """Largest divisor of B whose (tb, S, D) block fits the VMEM budget."""
    per_batch_bytes = S * D * itemsize
    max_tb = max(1, _VMEM_BLOCK_BUDGET // max(per_batch_bytes, 1))
    tb = 1
    for cand in range(1, B + 1):
        if B % cand == 0 and cand <= max_tb:
            tb = cand
    return tb


def positional_encoding(x, pe):
    B, S, D = x.shape
    pe_slice = pe[:S, :].astype(jnp.float32)                 # (S, D), constant under jit
    tb = _batch_tile(B, S, D, jnp.dtype(x.dtype).itemsize)

    return pl.pallas_call(
        functools.partial(posenc_kernel, scale=math.sqrt(float(D))),
        out_shape=jax.ShapeDtypeStruct((B, S, D), x.dtype),
        grid=(B // tb,),
        in_specs=[
            pl.BlockSpec((tb, S, D), lambda i: (i, 0, 0)),    # activation batch tile
            pl.BlockSpec((S, D), lambda i: (0, 0)),           # PE table, fetched once
        ],
        out_specs=pl.BlockSpec((tb, S, D), lambda i: (i, 0, 0)),
        compiler_params=pltpu.CompilerParams(
            dimension_semantics=("parallel",)),               # shard batch tiles across TCs
    )(x, pe_slice)


# ----------------------------- pure-JAX reference -----------------------------

def posenc_ref(x, pe):
    S, D = x.shape[1], x.shape[2]
    return x * math.sqrt(float(D)) + pe[None, :S, :]


# ----------------------------- main -----------------------------

if __name__ == "__main__":
    B, S = 2, 16
    key = jax.random.PRNGKey(0)
    x = jax.random.normal(key, (B, S, D_MODEL), jnp.float32)

    pe = make_pe_table(MAX_LEN, D_MODEL)

    fwd = jax.jit(positional_encoding)
    out = jax.block_until_ready(fwd(x, pe))

    ref = posenc_ref(x, pe)
    assert out.shape == (B, S, D_MODEL)
    assert jnp.allclose(out, ref, atol=1e-5, rtol=1e-5), "mismatch vs reference"

    print("KERNEL_OK")
</pallas_src>

<mosaic_0001>
module attributes {stable_mosaic.version = 11 : i64} {
  func.func @posenc_kernel(%arg0: i32, %arg1: memref<2x16x512xf32, #tpu.memory_space<vmem>>, %arg2: memref<16x512xf32, #tpu.memory_space<vmem>>, %arg3: memref<2x16x512xf32, #tpu.memory_space<vmem>>) attributes {dimension_semantics = [#tpu.dimension_semantics<parallel>], iteration_bounds = array<i64: 1>, scalar_prefetch = 0 : i64, scratch_operands = 0 : i64, tpu.core_type = #tpu.core_type<tc>, window_params = [{transform_indices = @transform_0, window_bounds = array<i64: 2, 16, 512>}, {pipeline_mode = #tpu.pipeline_mode<synchronous>, transform_indices = @transform_1, window_bounds = array<i64: 16, 512>}, {transform_indices = @transform_2, window_bounds = array<i64: 2, 16, 512>}]} {
    %c0 = arith.constant 0 : index
    %c0_0 = arith.constant 0 : index
    %c0_1 = arith.constant 0 : index
    %0 = vector.load %arg1[%c0, %c0_0, %c0_1] : memref<2x16x512xf32, #tpu.memory_space<vmem>>, vector<2x16x512xf32>
    %c0_2 = arith.constant 0 : index
    %c0_3 = arith.constant 0 : index
    %1 = vector.load %arg2[%c0_2, %c0_3] : memref<16x512xf32, #tpu.memory_space<vmem>>, vector<16x512xf32>
    %cst = arith.constant 22.6274166 : f32
    %2 = vector.broadcast %cst : f32 to vector<2x16x512xf32>
    %3 = arith.mulf %0, %2 : vector<2x16x512xf32>
    %4 = vector.shape_cast %1 : vector<16x512xf32> to vector<1x16x512xf32>
    %5 = vector.broadcast %4 : vector<1x16x512xf32> to vector<2x16x512xf32>
    %6 = arith.addf %3, %5 : vector<2x16x512xf32>
    %c0_4 = arith.constant 0 : index
    %c0_5 = arith.constant 0 : index
    %c0_6 = arith.constant 0 : index
    %7 = vector.load %arg3[%c0_4, %c0_5, %c0_6] : memref<2x16x512xf32, #tpu.memory_space<vmem>>, vector<2x16x512xf32>
    tpu.vector_store %arg3[%c0_4, %c0_5, %c0_6], %6 {strides = array<i32>} : memref<2x16x512xf32, #tpu.memory_space<vmem>>, vector<2x16x512xf32>,
    return
  }
  func.func @transform_0(%arg0: i32) -> (i32, i32, i32) {
    %c0_i32 = arith.constant 0 : i32
    %c0_i32_0 = arith.constant 0 : i32
    %c0_i32_1 = arith.constant 0 : i32
    return %arg0, %c0_i32, %c0_i32_0 : i32, i32, i32
  }
  func.func @transform_1(%arg0: i32) -> (i32, i32) {
    %c0_i32 = arith.constant 0 : i32
    %c0_i32_0 = arith.constant 0 : i32
    %c0_i32_1 = arith.constant 0 : i32
    return %c0_i32, %c0_i32_0 : i32, i32
  }
  func.func @transform_2(%arg0: i32) -> (i32, i32, i32) {
    %c0_i32 = arith.constant 0 : i32
    %c0_i32_0 = arith.constant 0 : i32
    %c0_i32_1 = arith.constant 0 : i32
    return %arg0, %c0_i32, %c0_i32_0 : i32, i32, i32
  }
}

</mosaic_0001>

<llo_original>
// kernel: positional_encoding.1
$region0: #{positional_encoding.1}
  #allocation0 [shape = 'u32[]', space=smem, size = 0x4, offset = 0x4, fixed_abs, tag = 'smem constant byte address 0x4 - core index']
  #allocation1 [shape = 'u32[144,128]{1,0:T(1,128)}', space=vmem, size = 0x12000, scoped, tag = 'internal scratch']
  %s0 = inlined_call_operand.hbm [shape: f32[2,16,512], index: 0, kind: input, shape index: {}]
  %s1 = inlined_call_operand.vmem [shape: f32[16,512], index: 1, kind: input, shape index: {}]
  %s2 = inlined_call_operand.hbm [shape: f32[2,16,512], index: 2, kind: output, shape index: {}]
  %s3 = sld [smem:[#allocation0]]
  $region22: #{positional_encoding.1} parent=0
    _
  %s5 = ssub.s32 1, %s3
  %s6 = scalar_select 0, %s5, %s3
  $region1: #{positional_encoding.1} parent=0
    #allocation2 [shape = 'u8[65536]{0}', space=vmem, size = 0x10000, scoped, tag = 'input window, operand 0, single buffered']
    #allocation3 [shape = 's32[1]{0}', space=sflag, size = 0x4, scoped, tag = 'scoped memory for positional_encoding.1']
    #allocation4 [shape = 's32[1]{0}', space=sflag, size = 0x4, scoped, tag = 'scoped memory for positional_encoding.1']
    #allocation5 [shape = 'u8[65536]{0}', space=vmem, size = 0x10000, scoped, tag = 'output window, operand 0, single buffered']
    %7 = vsyncpa [#allocation3], 0
    %8 = vsyncpa [#allocation4], 0
    // Predicated region
    $region2: #{positional_encoding.1} parent=1 // pred_check
      _
    $region3: #{positional_encoding.1} parent=1 // pred_check_branch
      %10 = sbr.rel (0) target = $region5
    $region4: #{positional_encoding.1} parent=1 // pred_region
      %s12 = ssub.s32 2048, 2048
      %13 = vsyncadd [#allocation3], %s12
      %s14 = sshll.u32 [#allocation2], 4
      %s15 = int_to_ptr.vmem [resolvable:$true] %s14
      %20 = dma.hbm_to_vmem [thread:$0]  %s0, 2048, %s15, [#allocation3], 512, 512, 32
    $region5: #{positional_encoding.1} parent=1 // pred_fallthru
      _
    // Predicated region
    $region6: #{positional_encoding.1} parent=1 // pred_check
      _
    $region7: #{positional_encoding.1} parent=1 // pred_check_branch
      %22 = sbr.rel (0) target = $region9
    $region8: #{positional_encoding.1} parent=1 // pred_region
      _
    $region9: #{positional_encoding.1} parent=1 // pred_fallthru
      _
    // Predicated region
    $region10: #{positional_encoding.1} parent=1 // pred_check
      _
    $region11: #{positional_encoding.1} parent=1 // pred_check_branch
      %24 = sbr.rel (0) target = $region13
    $region12: #{positional_encoding.1} parent=1 // pred_region
      %25 = dma.done [#allocation3], 2048
    $region13: #{positional_encoding.1} parent=1 // pred_fallthru
      _
    %v26 = vld [vmem:[#allocation2] sm:$0xff]
    %v27 = vld [vmem:[#allocation2 + $0x8] sm:$0xff]
    %v28 = vld [vmem:[#allocation2 + $0x10] sm:$0xff]
    %v29 = vld [vmem:[#allocation2 + $0x18] sm:$0xff]
    %v30 = vld [vmem:[#allocation2 + $0x20] sm:$0xff]
    %v31 = vld [vmem:[#allocation2 + $0x28] sm:$0xff]
    %v32 = vld [vmem:[#allocation2 + $0x30] sm:$0xff]
    %v33 = vld [vmem:[#allocation2 + $0x38] sm:$0xff]
    %v34 = vld [vmem:[#allocation2 + $0x40] sm:$0xff]
    %v35 = vld [vmem:[#allocation2 + $0x48] sm:$0xff]
    %v36 = vld [vmem:[#allocation2 + $0x50] sm:$0xff]
    %v37 = vld [vmem:[#allocation2 + $0x58] sm:$0xff]
    %v38 = vld [vmem:[#allocation2 + $0x60] sm:$0xff]
    %v39 = vld [vmem:[#allocation2 + $0x68] sm:$0xff]
    %v40 = vld [vmem:[#allocation2 + $0x70] sm:$0xff]
    %v41 = vld [vmem:[#allocation2 + $0x78] sm:$0xff]
    %v42 = vld [vmem:[%s1] sm:$0xff]
    %v43 = vld [vmem:[%s1 + $0x8] sm:$0xff]
    %v44 = vld [vmem:[%s1 + $0x10] sm:$0xff]
    %v45 = vld [vmem:[%s1 + $0x18] sm:$0xff]
    %v46 = vld [vmem:[%s1 + $0x20] sm:$0xff]
    %v47 = vld [vmem:[%s1 + $0x28] sm:$0xff]
    %v48 = vld [vmem:[%s1 + $0x30] sm:$0xff]
    %v49 = vld [vmem:[%s1 + $0x38] sm:$0xff]
    %v50 = vmul.f32 %v26, 22.627417
    %v51 = vmul.f32 %v27, 22.627417
    %v52 = vmul.f32 %v28, 22.627417
    %v53 = vmul.f32 %v29, 22.627417
    %v54 = vmul.f32 %v30, 22.627417
    %v55 = vmul.f32 %v31, 22.627417
    %v56 = vmul.f32 %v32, 22.627417
    %v57 = vmul.f32 %v33, 22.627417
    %v58 = vmul.f32 %v34, 22.627417
    %v59 = vmul.f32 %v35, 22.627417
    %v60 = vmul.f32 %v36, 22.627417
    %v61 = vmul.f32 %v37, 22.627417
    %v62 = vmul.f32 %v38, 22.627417
    %v63 = vmul.f32 %v39, 22.627417
    %v64 = vmul.f32 %v40, 22.627417
    %v65 = vmul.f32 %v41, 22.627417
    %v66 = vadd.f32 %v50, %v42
    %v67 = vadd.f32 %v51, %v43
    %v68 = vadd.f32 %v52, %v44
    %v69 = vadd.f32 %v53, %v45
    %v70 = vadd.f32 %v54, %v46
    %v71 = vadd.f32 %v55, %v47
    %v72 = vadd.f32 %v56, %v48
    %v73 = vadd.f32 %v57, %v49
    %v74 = vadd.f32 %v58, %v42
    %v75 = vadd.f32 %v59, %v43
    %v76 = vadd.f32 %v60, %v44
    %v77 = vadd.f32 %v61, %v45
    %v78 = vadd.f32 %v62, %v46
    %v79 = vadd.f32 %v63, %v47
    %v80 = vadd.f32 %v64, %v48
    %v81 = vadd.f32 %v65, %v49
    %82 = vst [vmem:[#allocation5] sm:$0xff] %v66
    %83 = vst [vmem:[#allocation5 + $0x8] sm:$0xff] %v67
    %84 = vst [vmem:[#allocation5 + $0x10] sm:$0xff] %v68
    %85 = vst [vmem:[#allocation5 + $0x18] sm:$0xff] %v69
    %86 = vst [vmem:[#allocation5 + $0x20] sm:$0xff] %v70
    %87 = vst [vmem:[#allocation5 + $0x28] sm:$0xff] %v71
    %88 = vst [vmem:[#allocation5 + $0x30] sm:$0xff] %v72
    %89 = vst [vmem:[#allocation5 + $0x38] sm:$0xff] %v73
    %90 = vst [vmem:[#allocation5 + $0x40] sm:$0xff] %v74
    %91 = vst [vmem:[#allocation5 + $0x48] sm:$0xff] %v75
    %92 = vst [vmem:[#allocation5 + $0x50] sm:$0xff] %v76
    %93 = vst [vmem:[#allocation5 + $0x58] sm:$0xff] %v77
    %94 = vst [vmem:[#allocation5 + $0x60] sm:$0xff] %v78
    %95 = vst [vmem:[#allocation5 + $0x68] sm:$0xff] %v79
    %96 = vst [vmem:[#allocation5 + $0x70] sm:$0xff] %v80
    %97 = vst [vmem:[#allocation5 + $0x78] sm:$0xff] %v81
    // Predicated region
    $region14: #{positional_encoding.1} parent=1 // pred_check
      _
    $region15: #{positional_encoding.1} parent=1 // pred_check_branch
      %99 = sbr.rel (0) target = $region17
    $region16: #{positional_encoding.1} parent=1 // pred_region
      %s101 = ssub.s32 2048, 2048
      %102 = vsyncadd [#allocation4], %s101
      %s103 = sshll.u32 [#allocation5], 4
      %s104 = int_to_ptr.vmem [resolvable:$true] %s103
      %109 = dma.vmem_to_hbm [thread:$0]  %s104, 2048, %s2, [#allocation4], 512, 512, 32
    $region17: #{positional_encoding.1} parent=1 // pred_fallthru
      _
    // Predicated region
    $region18: #{positional_encoding.1} parent=1 // pred_check
      _
    $region19: #{positional_encoding.1} parent=1 // pred_check_branch
      %111 = sbr.rel (0) target = $region21
    $region20: #{positional_encoding.1} parent=1 // pred_region
      %112 = dma.done [#allocation4], 2048
    $region21: #{positional_encoding.1} parent=1 // pred_fallthru
      _
    %113 = vsyncpa [#allocation3], 1
    %114 = vsyncpa [#allocation4], 1

</llo_original>
